<compile_context>
chip_gen: v5e
topology: v5e:2x2
jax: 0.10.0
libtpu: 0.0.40
codegen_flags: <defaults>
</compile_context>

<pallas_src>
import jax
import jax.numpy as jnp
import numpy as np
from jax.experimental import pallas as pl
from jax.experimental.pallas import tpu as pltpu


def _prompt_kernel_hbm(tgt_ref, bias_ref, ctx_ref, table_hbm, out_ref, sems):
    # tgt_ref   : SMEM (Bp,) int32                 scalar-prefetched class ids
    # bias_ref  : VMEM (TB, 1, D)
    # ctx_ref   : VMEM (n_ctx, D)
    # table_hbm : HBM  (n_cls, seq, D)             merged [prefix|zeros|suffix]
    # out_ref   : VMEM (TB, seq, D)
    # sems      : DMA semaphores (TB,)
    TB, seq, D = out_ref.shape
    n_ctx = ctx_ref.shape[0]
    base = pl.program_id(0) * TB

    # 1) One contiguous (1, seq, D) gather per batch element, all in flight at
    #    once, landing directly in the output block at sublane offset 0.
    #    (Padded tail rows gather class 0 -- harmless, sliced off by wrapper.)
    copies = []
    for b in range(TB):
        c = tgt_ref[base + b]                              # dynamic SMEM read
        cp = pltpu.make_async_copy(
            table_hbm.at[pl.ds(c, 1), :, :],               # (1, seq, D)
            out_ref.at[pl.ds(b, 1), :, :],                 # (1, seq, D)
            sems.at[b],
        )
        cp.start()
        copies.append(cp)

    # 2) ctx + bias for the whole tile, computed (in f32) before any wait so
    #    SMEM reads / VPU work stay ahead of the DMA waits.
    ctx_shifted = (ctx_ref[...][None, :, :].astype(jnp.float32)
                   + bias_ref[...].astype(jnp.float32)).astype(out_ref.dtype)

    # 3) Wait for the gathers, then overwrite the ctx rows (store must be
    #    ordered after the wait since the contiguous copy covered those rows).
    for cp in copies:
        cp.wait()
    if n_ctx > 0:
        out_ref[:, pl.ds(1, n_ctx), :] = ctx_shifted


def _prompt_kernel_vmem(tgt_ref, bias_ref, ctx_ref, table_ref, out_ref):
    # table_ref : VMEM (n_cls, seq, D) -- whole merged table resident in VMEM
    #             (constant block index => fetched from HBM only once).
    TB, seq, D = out_ref.shape
    n_ctx = ctx_ref.shape[0]
    base = pl.program_id(0) * TB

    # VMEM-local gather: no DMA issue overhead, no per-step HBM latency.
    for b in range(TB):
        c = tgt_ref[base + b]
        out_ref[b, :, :] = table_ref[c, :, :]

    if n_ctx > 0:
        ctx_shifted = (ctx_ref[...][None, :, :].astype(jnp.float32)
                       + bias_ref[...].astype(jnp.float32))
        out_ref[:, pl.ds(1, n_ctx), :] = ctx_shifted.astype(out_ref.dtype)


def prompt_learner_forward(bias, target, token_prefix, token_suffix, ctx, *,
                           tb=None, vmem_table_budget_bytes=8 * 1024 * 1024):
    """Pallas forward of PromptLearner_o.

    bias: [B, D]; target: [B] int class ids;
    token_prefix: [n_cls, 1, D]; token_suffix: [n_cls, n_suf, D]; ctx: [n_ctx, D].
    Returns prompts: [B, 1 + n_ctx + n_suf, D] in token_prefix.dtype.
    """
    out_dtype = token_prefix.dtype
    assert token_suffix.dtype == out_dtype
    B, D = bias.shape
    n_cls = token_prefix.shape[0]
    n_ctx = ctx.shape[0]
    n_suf = token_suffix.shape[1]
    seq = 1 + n_ctx + n_suf
    itemsize = jnp.dtype(out_dtype).itemsize
    row_bytes = seq * D * itemsize

    # Merged frozen table: row c = [prefix_c | zeros(n_ctx) | suffix_c]
    # => one contiguous, sublane-0-aligned gather per batch element.
    table = jnp.concatenate(
        [token_prefix, jnp.zeros((n_cls, n_ctx, D), out_dtype), token_suffix],
        axis=1)

    # Batch tile: target ~1 MiB output blocks (double-buffered by pipeline),
    # capped at 128 rows.  Bigger tiles amortize per-step overhead and keep
    # many gather DMAs concurrently in flight.
    if tb is None:
        tb = max(1, min(128, (1 << 20) // max(row_bytes, 1)))
    TB = int(max(1, min(tb, B)))
    pad = (-B) % TB
    if pad:
        bias = jnp.concatenate([bias, jnp.zeros((pad, D), bias.dtype)], axis=0)
        target = jnp.concatenate(
            [target, jnp.zeros((pad,), target.dtype)], axis=0)
    Bp = B + pad
    n_tiles = Bp // TB
    bias3 = bias.reshape(Bp, 1, D)
    target = target.astype(jnp.int32)

    table_bytes = n_cls * seq * D * itemsize
    use_vmem_table = table_bytes <= vmem_table_budget_bytes

    # Scoped-VMEM estimate (every BlockSpec operand is double-buffered).
    est = (2 * TB * row_bytes
           + 2 * TB * D * jnp.dtype(bias.dtype).itemsize
           + 2 * n_ctx * D * jnp.dtype(ctx.dtype).itemsize)
    if use_vmem_table:
        est += 2 * table_bytes
    compiler_kwargs = dict(dimension_semantics=("parallel",))
    if est > 12 * (1 << 20):
        # Above the most conservative (v5e) scoped default; raise the cap but
        # stay well under v7x's 64 MiB physical VMEM.
        compiler_kwargs["vmem_limit_bytes"] = int(min(48 * (1 << 20), 2 * est))

    bias_spec = pl.BlockSpec((TB, 1, D), lambda i, tgt: (i, 0, 0))
    ctx_spec = pl.BlockSpec((n_ctx, D), lambda i, tgt: (0, 0))
    out_spec = pl.BlockSpec((TB, seq, D), lambda i, tgt: (i, 0, 0))

    if use_vmem_table:
        kernel = _prompt_kernel_vmem
        table_spec = pl.BlockSpec((n_cls, seq, D), lambda i, tgt: (0, 0, 0))
        scratch_shapes = []
    else:
        kernel = _prompt_kernel_hbm
        table_spec = pl.BlockSpec(memory_space=pl.ANY)   # gathered by in-kernel DMA
        scratch_shapes = [pltpu.SemaphoreType.DMA((TB,))]

    grid_spec = pltpu.PrefetchScalarGridSpec(
        num_scalar_prefetch=1,            # `target` lands in SMEM
        grid=(n_tiles,),
        in_specs=[bias_spec, ctx_spec, table_spec],
        out_specs=out_spec,
        scratch_shapes=scratch_shapes,
    )

    out = pl.pallas_call(
        kernel,
        out_shape=jax.ShapeDtypeStruct((Bp, seq, D), out_dtype),
        grid_spec=grid_spec,
        compiler_params=pltpu.CompilerParams(**compiler_kwargs),
    )(target, bias3, ctx, table)

    return out[:B] if pad else out


if __name__ == "__main__":
    # Small deterministic synthetic setup consistent with the module:
    # n_cls classes, n_ctx=4 context tokens, CLIP-style total sequence length.
    n_cls = 6
    n_ctx = 4
    ctx_dim = 128
    seq_total = 16
    n_suffix = seq_total - 1 - n_ctx
    B = 6

    key = jax.random.PRNGKey(0)
    k_ctx, k_pre, k_suf, k_bias, k_tgt = jax.random.split(key, 5)

    # nn.init.normal_(ctx_vectors, std=0.02)
    ctx = (0.02 * jax.random.normal(k_ctx, (n_ctx, ctx_dim))).astype(jnp.float32)
    # TODO(synk): the real module fills token_prefix/token_suffix from
    # clip_model.token_embedding of tokenized class prompts; synthetic here.
    token_prefix = jax.random.normal(k_pre, (n_cls, 1, ctx_dim), jnp.float32)
    token_suffix = jax.random.normal(k_suf, (n_cls, n_suffix, ctx_dim), jnp.float32)
    bias = jax.random.normal(k_bias, (B, ctx_dim), jnp.float32)
    target = jax.random.randint(k_tgt, (B,), 0, n_cls, dtype=jnp.int32)

    def reference(bias, target, token_prefix, token_suffix, ctx):
        return jnp.concatenate(
            [token_prefix[target],
             (ctx[None, :, :].astype(jnp.float32)
              + bias[:, None, :].astype(jnp.float32)).astype(token_prefix.dtype),
             token_suffix[target]],
            axis=1)

    ref = reference(bias, target, token_prefix, token_suffix, ctx)

    # 1) Default path: merged table is tiny -> resident in VMEM, gather is
    #    dynamic VMEM indexing, single batch tile.
    out_vmem = jax.block_until_ready(
        prompt_learner_forward(bias, target, token_prefix, token_suffix, ctx))
    np.testing.assert_allclose(np.asarray(out_vmem), np.asarray(ref),
                               rtol=1e-6, atol=1e-6)

    # 2) HBM-table path with a small tile: exercises multi-tile grid, batch
    #    padding, and the manual per-element gather DMAs.
    out_hbm = jax.block_until_ready(
        prompt_learner_forward(bias, target, token_prefix, token_suffix, ctx,
                               tb=4, vmem_table_budget_bytes=0))
    np.testing.assert_allclose(np.asarray(out_hbm), np.asarray(ref),
                               rtol=1e-6, atol=1e-6)

    # 3) bf16 tables / bias / output (memory-bound kernel -> ~2x fewer HBM
    #    bytes); ctx+bias accumulates in f32 inside the kernel.
    bf = jnp.bfloat16
    out_bf16 = jax.block_until_ready(
        prompt_learner_forward(bias.astype(bf), target,
                               token_prefix.astype(bf), token_suffix.astype(bf),
                               ctx.astype(bf), tb=4, vmem_table_budget_bytes=0))
    ref_bf16 = reference(bias.astype(bf), target, token_prefix.astype(bf),
                         token_suffix.astype(bf), ctx.astype(bf))
    np.testing.assert_allclose(np.asarray(out_bf16.astype(jnp.float32)),
                               np.asarray(ref_bf16.astype(jnp.float32)),
                               rtol=1e-2, atol=1e-2)

    print("KERNEL_OK")
</pallas_src>

<mosaic_0001>
module attributes {stable_mosaic.version = 11 : i64} {
  func.func @_prompt_kernel_vmem(%arg0: i32, %arg1: memref<6xi32, #tpu.memory_space<smem>>, %arg2: memref<6x1x128xf32, #tpu.memory_space<vmem>>, %arg3: memref<4x128xf32, #tpu.memory_space<vmem>>, %arg4: memref<6x16x128xf32, #tpu.memory_space<vmem>>, %arg5: memref<6x16x128xf32, #tpu.memory_space<vmem>>) attributes {dimension_semantics = [#tpu.dimension_semantics<parallel>], iteration_bounds = array<i64: 1>, scalar_prefetch = 1 : i64, scratch_operands = 0 : i64, tpu.core_type = #tpu.core_type<tc>, window_params = [{transform_indices = @transform_0, window_bounds = array<i64: 6, 1, 128>}, {pipeline_mode = #tpu.pipeline_mode<synchronous>, transform_indices = @transform_1, window_bounds = array<i64: 4, 128>}, {pipeline_mode = #tpu.pipeline_mode<synchronous>, transform_indices = @transform_2, window_bounds = array<i64: 6, 16, 128>}, {transform_indices = @transform_3, window_bounds = array<i64: 6, 16, 128>}]} {
    %c6_i32 = arith.constant 6 : i32
    %0 = arith.muli %arg0, %c6_i32 : i32
    %c0_i32 = arith.constant 0 : i32
    %1 = arith.addi %0, %c0_i32 : i32
    %2 = arith.index_cast %1 : i32 to index
    %3 = memref.load %arg1[%2] : memref<6xi32, #tpu.memory_space<smem>>
    %4 = arith.index_cast %3 : i32 to index
    %c0 = arith.constant 0 : index
    %c0_0 = arith.constant 0 : index
    %5 = vector.load %arg4[%4, %c0, %c0_0] : memref<6x16x128xf32, #tpu.memory_space<vmem>>, vector<1x16x128xf32>
    %6 = vector.shape_cast %5 : vector<1x16x128xf32> to vector<16x128xf32>
    %c0_1 = arith.constant 0 : index
    %c0_2 = arith.constant 0 : index
    %c0_3 = arith.constant 0 : index
    %7 = vector.load %arg5[%c0_1, %c0_2, %c0_3] : memref<6x16x128xf32, #tpu.memory_space<vmem>>, vector<1x16x128xf32>
    %8 = vector.shape_cast %7 : vector<1x16x128xf32> to vector<16x128xf32>
    %9 = vector.shape_cast %6 : vector<16x128xf32> to vector<1x16x128xf32>
    tpu.vector_store %arg5[%c0_1, %c0_2, %c0_3], %9 {strides = array<i32>} : memref<6x16x128xf32, #tpu.memory_space<vmem>>, vector<1x16x128xf32>,
    %c1_i32 = arith.constant 1 : i32
    %10 = arith.addi %0, %c1_i32 : i32
    %11 = arith.index_cast %10 : i32 to index
    %12 = memref.load %arg1[%11] : memref<6xi32, #tpu.memory_space<smem>>
    %13 = arith.index_cast %12 : i32 to index
    %c0_4 = arith.constant 0 : index
    %c0_5 = arith.constant 0 : index
    %14 = vector.load %arg4[%13, %c0_4, %c0_5] : memref<6x16x128xf32, #tpu.memory_space<vmem>>, vector<1x16x128xf32>
    %15 = vector.shape_cast %14 : vector<1x16x128xf32> to vector<16x128xf32>
    %c1 = arith.constant 1 : index
    %c0_6 = arith.constant 0 : index
    %c0_7 = arith.constant 0 : index
    %16 = vector.load %arg5[%c1, %c0_6, %c0_7] : memref<6x16x128xf32, #tpu.memory_space<vmem>>, vector<1x16x128xf32>
    %17 = vector.shape_cast %16 : vector<1x16x128xf32> to vector<16x128xf32>
    %18 = vector.shape_cast %15 : vector<16x128xf32> to vector<1x16x128xf32>
    tpu.vector_store %arg5[%c1, %c0_6, %c0_7], %18 {strides = array<i32>} : memref<6x16x128xf32, #tpu.memory_space<vmem>>, vector<1x16x128xf32>,
    %c2_i32 = arith.constant 2 : i32
    %19 = arith.addi %0, %c2_i32 : i32
    %20 = arith.index_cast %19 : i32 to index
    %21 = memref.load %arg1[%20] : memref<6xi32, #tpu.memory_space<smem>>
    %22 = arith.index_cast %21 : i32 to index
    %c0_8 = arith.constant 0 : index
    %c0_9 = arith.constant 0 : index
    %23 = vector.load %arg4[%22, %c0_8, %c0_9] : memref<6x16x128xf32, #tpu.memory_space<vmem>>, vector<1x16x128xf32>
    %24 = vector.shape_cast %23 : vector<1x16x128xf32> to vector<16x128xf32>
    %c2 = arith.constant 2 : index
    %c0_10 = arith.constant 0 : index
    %c0_11 = arith.constant 0 : index
    %25 = vector.load %arg5[%c2, %c0_10, %c0_11] : memref<6x16x128xf32, #tpu.memory_space<vmem>>, vector<1x16x128xf32>
    %26 = vector.shape_cast %25 : vector<1x16x128xf32> to vector<16x128xf32>
    %27 = vector.shape_cast %24 : vector<16x128xf32> to vector<1x16x128xf32>
    tpu.vector_store %arg5[%c2, %c0_10, %c0_11], %27 {strides = array<i32>} : memref<6x16x128xf32, #tpu.memory_space<vmem>>, vector<1x16x128xf32>,
    %c3_i32 = arith.constant 3 : i32
    %28 = arith.addi %0, %c3_i32 : i32
    %29 = arith.index_cast %28 : i32 to index
    %30 = memref.load %arg1[%29] : memref<6xi32, #tpu.memory_space<smem>>
    %31 = arith.index_cast %30 : i32 to index
    %c0_12 = arith.constant 0 : index
    %c0_13 = arith.constant 0 : index
    %32 = vector.load %arg4[%31, %c0_12, %c0_13] : memref<6x16x128xf32, #tpu.memory_space<vmem>>, vector<1x16x128xf32>
    %33 = vector.shape_cast %32 : vector<1x16x128xf32> to vector<16x128xf32>
    %c3 = arith.constant 3 : index
    %c0_14 = arith.constant 0 : index
    %c0_15 = arith.constant 0 : index
    %34 = vector.load %arg5[%c3, %c0_14, %c0_15] : memref<6x16x128xf32, #tpu.memory_space<vmem>>, vector<1x16x128xf32>
    %35 = vector.shape_cast %34 : vector<1x16x128xf32> to vector<16x128xf32>
    %36 = vector.shape_cast %33 : vector<16x128xf32> to vector<1x16x128xf32>
    tpu.vector_store %arg5[%c3, %c0_14, %c0_15], %36 {strides = array<i32>} : memref<6x16x128xf32, #tpu.memory_space<vmem>>, vector<1x16x128xf32>,
    %c4_i32 = arith.constant 4 : i32
    %37 = arith.addi %0, %c4_i32 : i32
    %38 = arith.index_cast %37 : i32 to index
    %39 = memref.load %arg1[%38] : memref<6xi32, #tpu.memory_space<smem>>
    %40 = arith.index_cast %39 : i32 to index
    %c0_16 = arith.constant 0 : index
    %c0_17 = arith.constant 0 : index
    %41 = vector.load %arg4[%40, %c0_16, %c0_17] : memref<6x16x128xf32, #tpu.memory_space<vmem>>, vector<1x16x128xf32>
    %42 = vector.shape_cast %41 : vector<1x16x128xf32> to vector<16x128xf32>
    %c4 = arith.constant 4 : index
    %c0_18 = arith.constant 0 : index
    %c0_19 = arith.constant 0 : index
    %43 = vector.load %arg5[%c4, %c0_18, %c0_19] : memref<6x16x128xf32, #tpu.memory_space<vmem>>, vector<1x16x128xf32>
    %44 = vector.shape_cast %43 : vector<1x16x128xf32> to vector<16x128xf32>
    %45 = vector.shape_cast %42 : vector<16x128xf32> to vector<1x16x128xf32>
    tpu.vector_store %arg5[%c4, %c0_18, %c0_19], %45 {strides = array<i32>} : memref<6x16x128xf32, #tpu.memory_space<vmem>>, vector<1x16x128xf32>,
    %c5_i32 = arith.constant 5 : i32
    %46 = arith.addi %0, %c5_i32 : i32
    %47 = arith.index_cast %46 : i32 to index
    %48 = memref.load %arg1[%47] : memref<6xi32, #tpu.memory_space<smem>>
    %49 = arith.index_cast %48 : i32 to index
    %c0_20 = arith.constant 0 : index
    %c0_21 = arith.constant 0 : index
    %50 = vector.load %arg4[%49, %c0_20, %c0_21] : memref<6x16x128xf32, #tpu.memory_space<vmem>>, vector<1x16x128xf32>
    %51 = vector.shape_cast %50 : vector<1x16x128xf32> to vector<16x128xf32>
    %c5 = arith.constant 5 : index
    %c0_22 = arith.constant 0 : index
    %c0_23 = arith.constant 0 : index
    %52 = vector.load %arg5[%c5, %c0_22, %c0_23] : memref<6x16x128xf32, #tpu.memory_space<vmem>>, vector<1x16x128xf32>
    %53 = vector.shape_cast %52 : vector<1x16x128xf32> to vector<16x128xf32>
    %54 = vector.shape_cast %51 : vector<16x128xf32> to vector<1x16x128xf32>
    tpu.vector_store %arg5[%c5, %c0_22, %c0_23], %54 {strides = array<i32>} : memref<6x16x128xf32, #tpu.memory_space<vmem>>, vector<1x16x128xf32>,
    %c0_24 = arith.constant 0 : index
    %c0_25 = arith.constant 0 : index
    %55 = vector.load %arg3[%c0_24, %c0_25] : memref<4x128xf32, #tpu.memory_space<vmem>>, vector<4x128xf32>
    %56 = vector.shape_cast %55 : vector<4x128xf32> to vector<1x4x128xf32>
    %c0_26 = arith.constant 0 : index
    %c0_27 = arith.constant 0 : index
    %c0_28 = arith.constant 0 : index
    %57 = vector.load %arg2[%c0_26, %c0_27, %c0_28] : memref<6x1x128xf32, #tpu.memory_space<vmem>>, vector<6x1x128xf32>
    %58 = vector.broadcast %56 : vector<1x4x128xf32> to vector<6x4x128xf32>
    %59 = vector.broadcast %57 : vector<6x1x128xf32> to vector<6x4x128xf32>
    %60 = arith.addf %58, %59 : vector<6x4x128xf32>
    %c0_29 = arith.constant 0 : index
    %c1_30 = arith.constant 1 : index
    %c0_31 = arith.constant 0 : index
    %61 = vector.load %arg5[%c0_29, %c1_30, %c0_31] : memref<6x16x128xf32, #tpu.memory_space<vmem>>, vector<6x4x128xf32>
    tpu.vector_store %arg5[%c0_29, %c1_30, %c0_31], %60 {strides = array<i32>} : memref<6x16x128xf32, #tpu.memory_space<vmem>>, vector<6x4x128xf32>,
    return
  }
  func.func @transform_0(%arg0: i32, %arg1: memref<6xi32, #tpu.memory_space<smem>>) -> (i32, i32, i32) {
    %c0_i32 = arith.constant 0 : i32
    %c0_i32_0 = arith.constant 0 : i32
    %c0_i32_1 = arith.constant 0 : i32
    return %arg0, %c0_i32, %c0_i32_0 : i32, i32, i32
  }
  func.func @transform_1(%arg0: i32, %arg1: memref<6xi32, #tpu.memory_space<smem>>) -> (i32, i32) {
    %c0_i32 = arith.constant 0 : i32
    %c0_i32_0 = arith.constant 0 : i32
    %c0_i32_1 = arith.constant 0 : i32
    return %c0_i32, %c0_i32_0 : i32, i32
  }
  func.func @transform_2(%arg0: i32, %arg1: memref<6xi32, #tpu.memory_space<smem>>) -> (i32, i32, i32) {
    %c0_i32 = arith.constant 0 : i32
    %c0_i32_0 = arith.constant 0 : i32
    %c0_i32_1 = arith.constant 0 : i32
    %c0_i32_2 = arith.constant 0 : i32
    return %c0_i32, %c0_i32_0, %c0_i32_1 : i32, i32, i32
  }
  func.func @transform_3(%arg0: i32, %arg1: memref<6xi32, #tpu.memory_space<smem>>) -> (i32, i32, i32) {
    %c0_i32 = arith.constant 0 : i32
    %c0_i32_0 = arith.constant 0 : i32
    %c0_i32_1 = arith.constant 0 : i32
    return %arg0, %c0_i32, %c0_i32_0 : i32, i32, i32
  }
}

</mosaic_0001>

<llo_original>
// kernel: tpu_custom_call.1
$region0: #{tpu_custom_call.1}
  #allocation0 [shape = 'u32[]', space=smem, size = 0x4, offset = 0x4, fixed_abs, tag = 'smem constant byte address 0x4 - core index']
  #allocation1 [shape = 'u32[72,128]{1,0:T(1,128)}', space=vmem, size = 0x9000, scoped, tag = 'internal scratch']
  #allocation2 [shape = 's32[1]{0}', space=sflag, size = 0x4, scoped, tag = 'scoped memory for tpu_custom_call.1']
  #allocation3 [shape = 'u8[512]{0}', space=smem, size = 0x200, scoped, tag = 'prefetched SMEM operand 0']
  %s0 = inlined_call_operand.hbm [shape: s32[6], index: 0, kind: input, shape index: {}]
  %s1 = inlined_call_operand.hbm [shape: f32[6,1,128], index: 1, kind: input, shape index: {}]
  %s2 = inlined_call_operand.hbm [shape: f32[4,128], index: 2, kind: input, shape index: {}]
  %s3 = inlined_call_operand.hbm [shape: f32[6,16,128], index: 3, kind: input, shape index: {}]
  %s4 = inlined_call_operand.hbm [shape: f32[6,16,128], index: 4, kind: output, shape index: {}]
  %s5 = sld [smem:[#allocation0]]
  $region34: #{tpu_custom_call.1} parent=0
    _
  %s7 = ssub.s32 1, %s5
  %s8 = scalar_select 0, %s7, %s5
  %s10 = sshll.u32 %s0, 4
  %s11 = int_to_ptr.hbm [resolvable:$true] %s10
  %13 = dma.hbm_to_smem %s11, 16, [#allocation3], [#allocation2]
  %15 = dma.done [#allocation2], 16
  %16 = sfence
  $region1: #{tpu_custom_call.1} parent=0
    #allocation4 [shape = 'u8[3072]{0}', space=vmem, size = 0xc00, scoped, tag = 'input window, operand 1, single buffered']
    #allocation5 [shape = 's32[1]{0}', space=sflag, size = 0x4, scoped, tag = 'scoped memory for tpu_custom_call.1']
    #allocation6 [shape = 's32[1]{0}', space=sflag, size = 0x4, scoped, tag = 'scoped memory for tpu_custom_call.1']
    #allocation7 [shape = 'u8[2048]{0}', space=vmem, size = 0x800, scoped, tag = 'input window, operand 2, single buffered']
    #allocation8 [shape = 's32[1]{0}', space=sflag, size = 0x4, scoped, tag = 'scoped memory for tpu_custom_call.1']
    #allocation9 [shape = 'u8[49152]{0}', space=vmem, size = 0xc000, scoped, tag = 'input window, operand 3, single buffered']
    #allocation10 [shape = 'u8[49152]{0}', space=vmem, size = 0xc000, scoped, tag = 'output window, operand 0, single buffered']
    %17 = vsyncpa [#allocation5], 0
    %18 = vsyncpa [#allocation8], 0
    %19 = vsyncpa [#allocation6], 0
    // Predicated region
    $region2: #{tpu_custom_call.1} parent=1 // pred_check
      _
    $region3: #{tpu_custom_call.1} parent=1 // pred_check_branch
      %21 = sbr.rel (0) target = $region5
    $region4: #{tpu_custom_call.1} parent=1 // pred_region
      %23 = vsyncadd [#allocation5], 0
      %s24 = sshll.u32 %s1, 4
      %s25 = int_to_ptr.hbm [resolvable:$true] %s24
      %s26 = sshll.u32 [#allocation4], 4
      %s27 = int_to_ptr.vmem [resolvable:$true] %s26
      %32 = dma.hbm_to_vmem [thread:$0]  %s25, 96, %s27, [#allocation5], 16, 16, 1
    $region5: #{tpu_custom_call.1} parent=1 // pred_fallthru
      _
    // Predicated region
    $region6: #{tpu_custom_call.1} parent=1 // pred_check
      _
    $region7: #{tpu_custom_call.1} parent=1 // pred_check_branch
      %34 = sbr.rel (0) target = $region9
    $region8: #{tpu_custom_call.1} parent=1 // pred_region
      %36 = vsyncadd [#allocation8], 0
      %s38 = sshll.u32 %s2, 4
      %s39 = int_to_ptr.hbm [resolvable:$true] %s38
      %s40 = sshll.u32 [#allocation7], 4
      %s41 = int_to_ptr.vmem [resolvable:$true] %s40
      %43 = dma.hbm_to_vmem [thread:$0]  %s39, 64, %s41, [#allocation8]
    $region9: #{tpu_custom_call.1} parent=1 // pred_fallthru
      _
    // Predicated region
    $region10: #{tpu_custom_call.1} parent=1 // pred_check
      _
    $region11: #{tpu_custom_call.1} parent=1 // pred_check_branch
      %45 = sbr.rel (0) target = $region13
    $region12: #{tpu_custom_call.1} parent=1 // pred_region
      %47 = vsyncadd [#allocation8], 0
      %s48 = sshll.u32 %s3, 4
      %s49 = int_to_ptr.hbm [resolvable:$true] %s48
      %s50 = sshll.u32 [#allocation9], 4
      %s51 = int_to_ptr.vmem [resolvable:$true] %s50
      %56 = dma.hbm_to_vmem [thread:$0]  %s49, 1536, %s51, [#allocation8], 128, 128, 8
    $region13: #{tpu_custom_call.1} parent=1 // pred_fallthru
      _
    // Predicated region
    $region14: #{tpu_custom_call.1} parent=1 // pred_check
      _
    $region15: #{tpu_custom_call.1} parent=1 // pred_check_branch
      %58 = sbr.rel (0) target = $region17
    $region16: #{tpu_custom_call.1} parent=1 // pred_region
      %60 = dma.done [#allocation5], 96
    $region17: #{tpu_custom_call.1} parent=1 // pred_fallthru
      _
    // Predicated region
    $region18: #{tpu_custom_call.1} parent=1 // pred_check
      _
    $region19: #{tpu_custom_call.1} parent=1 // pred_check_branch
      %62 = sbr.rel (0) target = $region21
    $region20: #{tpu_custom_call.1} parent=1 // pred_region
      %64 = dma.done [#allocation8], 64
    $region21: #{tpu_custom_call.1} parent=1 // pred_fallthru
      _
    // Predicated region
    $region22: #{tpu_custom_call.1} parent=1 // pred_check
      _
    $region23: #{tpu_custom_call.1} parent=1 // pred_check_branch
      %66 = sbr.rel (0) target = $region25
    $region24: #{tpu_custom_call.1} parent=1 // pred_region
      %68 = dma.done [#allocation8], 1536
    $region25: #{tpu_custom_call.1} parent=1 // pred_fallthru
      _
    %s69 = smul.u32 0, 6
    %s70 = sld [smem:[#allocation3 + %s69]]
    %s71 = smul.u32 %s70, 16
    %s72 = scalar_lea.vmem [#allocation9], %s71
    %v73 = vld [vmem:[%s72] sm:$0xff]
    %v74 = vld [vmem:[%s72 + $0x8] sm:$0xff]
    %75 = vst [vmem:[#allocation10] sm:$0xff] %v73
    %76 = vst [vmem:[#allocation10 + $0x8] sm:$0xff] %v74
    %s77 = sadd.s32 %s69, 1
    %s78 = sld [smem:[#allocation3 + %s77]]
    %s79 = smul.u32 %s78, 16
    %s80 = scalar_lea.vmem [#allocation9], %s79
    %v81 = vld [vmem:[%s80] sm:$0xff]
    %v82 = vld [vmem:[%s80 + $0x8] sm:$0xff]
    %s83 = scalar_lea.vmem [#allocation10], 16
    %84 = vst [vmem:[%s83] sm:$0xff] %v81
    %85 = vst [vmem:[%s83 + $0x8] sm:$0xff] %v82
    %s86 = sadd.s32 %s69, 2
    %s87 = sld [smem:[#allocation3 + %s86]]
    %s88 = smul.u32 %s87, 16
    %s89 = scalar_lea.vmem [#allocation9], %s88
    %v90 = vld [vmem:[%s89] sm:$0xff]
    %v91 = vld [vmem:[%s89 + $0x8] sm:$0xff]
    %s92 = scalar_lea.vmem [#allocation10], 32
    %93 = vst [vmem:[%s92] sm:$0xff] %v90
    %94 = vst [vmem:[%s92 + $0x8] sm:$0xff] %v91
    %s95 = sadd.s32 %s69, 3
    %s96 = sld [smem:[#allocation3 + %s95]]
    %s97 = smul.u32 %s96, 16
    %s98 = scalar_lea.vmem [#allocation9], %s97
    %v99 = vld [vmem:[%s98] sm:$0xff]
    %v100 = vld [vmem:[%s98 + $0x8] sm:$0xff]
    %s101 = scalar_lea.vmem [#allocation10], 48
    %102 = vst [vmem:[%s101] sm:$0xff] %v99
    %103 = vst [vmem:[%s101 + $0x8] sm:$0xff] %v100
    %s104 = sadd.s32 %s69, 4
    %s105 = sld [smem:[#allocation3 + %s104]]
    %s106 = smul.u32 %s105, 16
    %s107 = scalar_lea.vmem [#allocation9], %s106
    %v108 = vld [vmem:[%s107] sm:$0xff]
    %v109 = vld [vmem:[%s107 + $0x8] sm:$0xff]
    %s110 = scalar_lea.vmem [#allocation10], 64
    %111 = vst [vmem:[%s110] sm:$0xff] %v108
    %112 = vst [vmem:[%s110 + $0x8] sm:$0xff] %v109
    %s113 = sadd.s32 %s69, 5
    %s114 = sld [smem:[#allocation3 + %s113]]
    %s115 = smul.u32 %s114, 16
    %s116 = scalar_lea.vmem [#allocation9], %s115
    %v117 = vld [vmem:[%s116] sm:$0xff]
    %v118 = vld [vmem:[%s116 + $0x8] sm:$0xff]
    %s119 = scalar_lea.vmem [#allocation10], 80
    %120 = vst [vmem:[%s119] sm:$0xff] %v117
    %121 = vst [vmem:[%s119 + $0x8] sm:$0xff] %v118
    %v122 = vld [vmem:[#allocation7] sm:$0xf]
    %v123 = vld [vmem:[#allocation4] sm:$0x1]
    %v124 = vld [vmem:[#allocation4 + $0x1] sm:$0x1]
    %v125 = vld [vmem:[#allocation4 + $0x2] sm:$0x1]
    %v126 = vld [vmem:[#allocation4 + $0x3] sm:$0x1]
    %v127 = vld [vmem:[#allocation4 + $0x4] sm:$0x1]
    %v128 = vld [vmem:[#allocation4 + $0x5] sm:$0x1]
    %v135 = vperm.slane %v123, 0
    %v136 = vperm.slane %v124, 0
    %v137 = vperm.slane %v125, 0
    %v138 = vperm.slane %v126, 0
    %v139 = vperm.slane %v127, 0
    %v140 = vperm.slane %v128, 0
    %v147 = vadd.f32 %v122, %v135
    %v148 = vadd.f32 %v122, %v136
    %v149 = vadd.f32 %v122, %v137
    %v150 = vadd.f32 %v122, %v138
    %v151 = vadd.f32 %v122, %v139
    %v152 = vadd.f32 %v122, %v140
    %153 = vst [vmem:[#allocation10 + $0x1] sm:$0xf] %v147
    %154 = vst [vmem:[#allocation10 + $0x11] sm:$0xf] %v148
    %155 = vst [vmem:[#allocation10 + $0x21] sm:$0xf] %v149
    %156 = vst [vmem:[#allocation10 + $0x31] sm:$0xf] %v150
    %157 = vst [vmem:[#allocation10 + $0x41] sm:$0xf] %v151
    %158 = vst [vmem:[#allocation10 + $0x51] sm:$0xf] %v152
    // Predicated region
    $region26: #{tpu_custom_call.1} parent=1 // pred_check
      _
    $region27: #{tpu_custom_call.1} parent=1 // pred_check_branch
      %160 = sbr.rel (0) target = $region29
    $region28: #{tpu_custom_call.1} parent=1 // pred_region
      %162 = vsyncadd [#allocation6], 0
      %s163 = sshll.u32 [#allocation10], 4
      %s164 = int_to_ptr.vmem [resolvable:$true] %s163
      %s165 = sshll.u32 %s4, 4
      %s166 = int_to_ptr.hbm [resolvable:$true] %s165
      %171 = dma.vmem_to_hbm [thread:$0]  %s164, 1536, %s166, [#allocation6], 128, 128, 8
    $region29: #{tpu_custom_call.1} parent=1 // pred_fallthru
      _
    // Predicated region
    $region30: #{tpu_custom_call.1} parent=1 // pred_check
      _
    $region31: #{tpu_custom_call.1} parent=1 // pred_check_branch
      %173 = sbr.rel (0) target = $region33
    $region32: #{tpu_custom_call.1} parent=1 // pred_region
      %175 = dma.done [#allocation6], 1536
    $region33: #{tpu_custom_call.1} parent=1 // pred_fallthru
      _
    %176 = vsyncpa [#allocation5], 1
    %177 = vsyncpa [#allocation8], 1
    %178 = vsyncpa [#allocation6], 1

</llo_original>
